<compile_context>
chip_gen: v5e
topology: v5e:2x2
jax: 0.10.0
libtpu: 0.0.40
codegen_flags: <defaults>
</compile_context>

<pallas_src>
import functools
import math
from typing import NamedTuple

import jax
import jax.numpy as jnp
from jax.experimental import pallas as pl
from jax.experimental.pallas import tpu as pltpu


# --------------------------------------------------------------------------
# small static helpers (all Python ints, evaluated at trace time)
# --------------------------------------------------------------------------
def _round_up(a: int, b: int) -> int:
    return ((a + b - 1) // b) * b


def _sublane_multiple(dtype) -> int:
    # sub-32-bit dtypes pack 2/4 rows per sublane -> round row tiles accordingly
    return max(8, 32 // max(jnp.dtype(dtype).itemsize, 1))


def _pick_row_tile(rows: int, tm: int, sub: int) -> int:
    """Largest sublane-rounded row tile that does not pad `rows` far past its
    value (avoids wasted MXU work + HBM writeback on the last tile)."""
    rows_sub = _round_up(rows, sub)
    tm = _round_up(max(tm, sub), sub)
    if rows_sub <= tm:
        return rows_sub                       # single tile, only sublane padding
    cands = []
    t = tm
    while t >= sub and len(cands) < 4:        # tm, tm/2, tm/4, tm/8
        t_r = _round_up(t, sub)
        if t_r not in cands:
            cands.append(t_r)
        t //= 2
    best = None
    for t in cands:
        rows_p = _round_up(rows, t)
        waste = rows_p - rows
        if waste * 8 <= rows_p:               # <= 12.5% padded waste: take it
            return t
        if best is None or waste < best[1]:
            best = (t, waste)
    return best[0]


def _pick_k_tile(dh_p: int, tk: int) -> int:
    """Contraction tile: multiple of 128 that divides the (128-padded) Dh."""
    tk = max(128, min(tk, dh_p))
    tk = (tk // 128) * 128
    while dh_p % tk:
        tk -= 128
    return tk


def _vmem_limit_bytes(footprint: int) -> int:
    # 25% slack + 2 MiB for compiler-internal scratch; floor at the 32 MiB
    # default, cap below physical VMEM (128 MiB v5e/v6e, 64 MiB/TC v7x).
    return int(min(max(footprint * 5 // 4 + (2 << 20), 32 << 20), 100 << 20))


# --------------------------------------------------------------------------
# one-time parameter preparation (hoisted out of the per-call path)
# --------------------------------------------------------------------------
class HeadParams(NamedTuple):
    w1: jax.Array   # (dh_p, dh_p)
    b1: jax.Array   # (1, dh_p)  f32
    w2: jax.Array   # (dh_p, nc_p)
    b2: jax.Array   # (1, nc_p)  f32


def prepare_params(w1, b1, w2, b2) -> HeadParams:
    """Zero-pad weights/biases to lane-dense (multiple-of-128) shapes ONCE."""
    num_hiddens, num_classes = w1.shape[0], w2.shape[1]
    dh_p = _round_up(max(num_hiddens, 128), 128)
    nc_p = _round_up(max(num_classes, 128), 128)
    dpad, cpad = dh_p - num_hiddens, nc_p - num_classes
    if dpad:
        w1 = jnp.pad(w1, ((0, dpad), (0, dpad)))
    if dpad or cpad:
        w2 = jnp.pad(w2, ((0, dpad), (0, cpad)))
    b1p = jnp.pad(b1.astype(jnp.float32), (0, dpad)).reshape(1, dh_p)
    b2p = jnp.pad(b2.astype(jnp.float32), (0, cpad)).reshape(1, nc_p)
    return HeadParams(w1=w1, b1=b1p, w2=w2, b2=b2p)


# --------------------------------------------------------------------------
# kernels
# --------------------------------------------------------------------------
def _head_kernel_resident(x_ref, w1_ref, b1_ref, w2_ref, b2_ref, o_ref):
    # GEMM1: native-dtype MXU feed, f32 accumulation.
    h = jnp.dot(x_ref[...], w1_ref[...], preferred_element_type=jnp.float32)
    h = jnp.maximum(h + b1_ref[...], 0.0)
    # GEMM2: cast intermediate back to weight dtype for the MXU feed.
    out = jnp.dot(h.astype(w2_ref.dtype), w2_ref[...],
                  preferred_element_type=jnp.float32)
    o_ref[...] = (out + b2_ref[...]).astype(o_ref.dtype)


def _head_kernel_ktiled(x_ref, w1_ref, b1_ref, w2_ref, b2_ref, o_ref, h_acc):
    # Streams W1 slabs of shape (tk, dh_p) over the last ("arbitrary") grid
    # axis, accumulating GEMM1 into an f32 VMEM scratch; bias/ReLU/GEMM2 run
    # once on the final K step (output block is resident across K).
    k = pl.program_id(1)

    @pl.when(k == 0)
    def _():
        h_acc[...] = jnp.zeros_like(h_acc)

    h_acc[...] += jnp.dot(x_ref[...], w1_ref[...],
                          preferred_element_type=jnp.float32)

    @pl.when(k == pl.num_programs(1) - 1)
    def _():
        h = jnp.maximum(h_acc[...] + b1_ref[...], 0.0)
        out = jnp.dot(h.astype(w2_ref.dtype), w2_ref[...],
                      preferred_element_type=jnp.float32)
        o_ref[...] = (out + b2_ref[...]).astype(o_ref.dtype)


# --------------------------------------------------------------------------
# wrapper
# --------------------------------------------------------------------------
def classification_head(x, params: HeadParams, *, num_classes: int,
                        tm: int = 256, tk: int = 512, x_buffers: int = 2,
                        force_k_tiling: bool = False):
    """x: (..., num_hiddens) -> (..., num_classes).

    `params` must come from prepare_params() (padded once at init).

    Tuning:
      tm: rows per tile. 512-1024 on v6e (128 MiB VMEM), ~256 on v7x (64 MiB
        per TC -- budget the tm x dh_p f32 intermediate), 128-256 on v5e.
      tk: contraction tile for the K-streamed path; that path is selected
        automatically when the resident weights would exceed ~40 MiB of VMEM
        (e.g. f32 num_hiddens >= ~2048), or when force_k_tiling=True.
      x_buffers: raise to 3 if profiling shows exposed DMA on the streamed x
        tiles (small num_hiddens, very large rows).
    """
    num_hiddens = x.shape[-1]
    dh_p = params.w1.shape[0]
    nc_p = params.w2.shape[1]
    if dh_p % 128 or nc_p % 128 or dh_p < num_hiddens or nc_p < num_classes:
        raise ValueError("params must come from prepare_params()")

    lead_shape = x.shape[:-1]
    rows = math.prod(lead_shape) if lead_shape else 1

    sub = _sublane_multiple(x.dtype)
    tm_eff = _pick_row_tile(rows, tm, sub)
    rows_p = _round_up(rows, tm_eff)

    x2d = x.reshape(rows, num_hiddens)
    pad_r, pad_c = rows_p - rows, dh_p - num_hiddens
    if pad_r or pad_c:
        x2d = jnp.pad(x2d, ((0, pad_r), (0, pad_c)))

    x_it = jnp.dtype(x.dtype).itemsize
    w1_it = jnp.dtype(params.w1.dtype).itemsize
    w2_it = jnp.dtype(params.w2.dtype).itemsize
    out_it = x_it

    # Resident weights are single-buffered (pl.Buffered(1)).
    w_bytes = dh_p * dh_p * w1_it + dh_p * nc_p * w2_it + (dh_p + nc_p) * 4
    use_k = force_k_tiling or w_bytes > (40 << 20)

    # Accurate (padded, per-operand-dtype) cost hint for the XLA scheduler.
    cost = pl.CostEstimate(
        flops=2 * rows_p * dh_p * dh_p + 2 * rows_p * dh_p * nc_p,
        transcendentals=0,
        bytes_accessed=(rows_p * dh_p * x_it + dh_p * dh_p * w1_it
                        + dh_p * nc_p * w2_it + (dh_p + nc_p) * 4
                        + rows_p * nc_p * out_it),
    )

    if not use_k:
        footprint = (w_bytes
                     + x_buffers * tm_eff * dh_p * x_it     # pipelined x tiles
                     + 2 * tm_eff * nc_p * out_it           # double-buffered out
                     + tm_eff * dh_p * 4                    # f32 intermediate h
                     + tm_eff * nc_p * 4)                   # f32 pre-store out
        out_p = pl.pallas_call(
            _head_kernel_resident,
            out_shape=jax.ShapeDtypeStruct((rows_p, nc_p), x.dtype),
            grid=(rows_p // tm_eff,),
            in_specs=[
                pl.BlockSpec((tm_eff, dh_p), lambda i: (i, 0),
                             pipeline_mode=pl.Buffered(x_buffers)),  # x (streamed)
                pl.BlockSpec((dh_p, dh_p), lambda i: (0, 0),
                             pipeline_mode=pl.Buffered(1)),          # W1 (resident)
                pl.BlockSpec((1, dh_p), lambda i: (0, 0),
                             pipeline_mode=pl.Buffered(1)),          # b1 (resident)
                pl.BlockSpec((dh_p, nc_p), lambda i: (0, 0),
                             pipeline_mode=pl.Buffered(1)),          # W2 (resident)
                pl.BlockSpec((1, nc_p), lambda i: (0, 0),
                             pipeline_mode=pl.Buffered(1)),          # b2 (resident)
            ],
            out_specs=pl.BlockSpec((tm_eff, nc_p), lambda i: (i, 0)),
            compiler_params=pltpu.CompilerParams(
                dimension_semantics=("parallel",),
                vmem_limit_bytes=_vmem_limit_bytes(footprint)),
            cost_estimate=cost,
        )(x2d, params.w1, params.b1, params.w2, params.b2)
    else:
        tk_eff = _pick_k_tile(dh_p, tk)
        footprint = (2 * tk_eff * dh_p * w1_it               # streamed W1 slabs
                     + dh_p * nc_p * w2_it + (dh_p + nc_p) * 4
                     + x_buffers * tm_eff * tk_eff * x_it
                     + 2 * tm_eff * nc_p * out_it
                     + tm_eff * dh_p * 4                     # f32 h accumulator
                     + tm_eff * nc_p * 4)
        out_p = pl.pallas_call(
            _head_kernel_ktiled,
            out_shape=jax.ShapeDtypeStruct((rows_p, nc_p), x.dtype),
            grid=(rows_p // tm_eff, dh_p // tk_eff),
            in_specs=[
                pl.BlockSpec((tm_eff, tk_eff), lambda i, k: (i, k),
                             pipeline_mode=pl.Buffered(x_buffers)),  # x (streamed)
                pl.BlockSpec((tk_eff, dh_p), lambda i, k: (k, 0)),   # W1 slabs
                pl.BlockSpec((1, dh_p), lambda i, k: (0, 0),
                             pipeline_mode=pl.Buffered(1)),          # b1 (resident)
                pl.BlockSpec((dh_p, nc_p), lambda i, k: (0, 0),
                             pipeline_mode=pl.Buffered(1)),          # W2 (resident)
                pl.BlockSpec((1, nc_p), lambda i, k: (0, 0),
                             pipeline_mode=pl.Buffered(1)),          # b2 (resident)
            ],
            out_specs=pl.BlockSpec((tm_eff, nc_p), lambda i, k: (i, 0)),
            scratch_shapes=[pltpu.VMEM((tm_eff, dh_p), jnp.float32)],
            compiler_params=pltpu.CompilerParams(
                dimension_semantics=("parallel", "arbitrary"),
                vmem_limit_bytes=_vmem_limit_bytes(footprint)),
            cost_estimate=cost,
        )(x2d, params.w1, params.b1, params.w2, params.b2)

    out = out_p[:rows, :num_classes]
    return out.reshape(*lead_shape, num_classes)


# --------------------------------------------------------------------------
# init + demo
# --------------------------------------------------------------------------
def init_params(key, num_hiddens, num_classes, dtype=jnp.float32):
    """Deterministic init mimicking PyTorch Linear default (uniform +/- 1/sqrt(fan_in))."""
    k1, k2, k3, k4 = jax.random.split(key, 4)
    bound = 1.0 / (num_hiddens ** 0.5)
    w1 = jax.random.uniform(k1, (num_hiddens, num_hiddens), dtype, -bound, bound)
    b1 = jax.random.uniform(k2, (num_hiddens,), dtype, -bound, bound)
    w2 = jax.random.uniform(k3, (num_hiddens, num_classes), dtype, -bound, bound)
    b2 = jax.random.uniform(k4, (num_classes,), dtype, -bound, bound)
    return w1, b1, w2, b2


if __name__ == "__main__":
    num_hiddens, num_classes = 32, 10
    batch, seq = 2, 8

    key = jax.random.PRNGKey(0)
    kx, kp = jax.random.split(key)
    x = jax.random.normal(kx, (batch, seq, num_hiddens), jnp.float32)
    w1, b1, w2, b2 = init_params(kp, num_hiddens, num_classes)

    # Pad weights ONCE (hoisted out of the per-call path).
    params = prepare_params(w1, b1, w2, b2)

    ref = jnp.maximum(x @ w1 + b1, 0.0) @ w2 + b2

    # Resident-weight path (default).
    head = jax.jit(functools.partial(classification_head, num_classes=num_classes))
    out = jax.block_until_ready(head(x, params))
    assert out.shape == (batch, seq, num_classes)
    assert jnp.allclose(out, ref, atol=1e-5, rtol=1e-5)

    # Also exercise the K-streamed path (used automatically for large Dh).
    head_k = jax.jit(functools.partial(classification_head, num_classes=num_classes,
                                       force_k_tiling=True, tk=128))
    out_k = jax.block_until_ready(head_k(x, params))
    assert jnp.allclose(out_k, ref, atol=1e-5, rtol=1e-5)

    print("KERNEL_OK")
</pallas_src>

<mosaic_0001>
module attributes {stable_mosaic.version = 11 : i64} {
  func.func @_head_kernel_resident(%arg0: i32, %arg1: memref<16x128xf32, #tpu.memory_space<vmem>>, %arg2: memref<128x128xf32, #tpu.memory_space<vmem>>, %arg3: memref<1x128xf32, #tpu.memory_space<vmem>>, %arg4: memref<128x128xf32, #tpu.memory_space<vmem>>, %arg5: memref<1x128xf32, #tpu.memory_space<vmem>>, %arg6: memref<16x128xf32, #tpu.memory_space<vmem>>) attributes {dimension_semantics = [#tpu.dimension_semantics<parallel>], iteration_bounds = array<i64: 1>, scalar_prefetch = 0 : i64, scratch_operands = 0 : i64, tpu.core_type = #tpu.core_type<tc>, window_params = [{pipeline_mode = #tpu.pipeline_mode<double_buffered>, transform_indices = @transform_0, window_bounds = array<i64: 16, 128>}, {pipeline_mode = #tpu.pipeline_mode<synchronous>, transform_indices = @transform_1, window_bounds = array<i64: 128, 128>}, {pipeline_mode = #tpu.pipeline_mode<synchronous>, transform_indices = @transform_2, window_bounds = array<i64: 1, 128>}, {pipeline_mode = #tpu.pipeline_mode<synchronous>, transform_indices = @transform_3, window_bounds = array<i64: 128, 128>}, {pipeline_mode = #tpu.pipeline_mode<synchronous>, transform_indices = @transform_4, window_bounds = array<i64: 1, 128>}, {transform_indices = @transform_5, window_bounds = array<i64: 16, 128>}]} {
    %c0 = arith.constant 0 : index
    %c0_0 = arith.constant 0 : index
    %0 = vector.load %arg1[%c0, %c0_0] : memref<16x128xf32, #tpu.memory_space<vmem>>, vector<16x128xf32>
    %c0_1 = arith.constant 0 : index
    %c0_2 = arith.constant 0 : index
    %1 = vector.load %arg2[%c0_1, %c0_2] : memref<128x128xf32, #tpu.memory_space<vmem>>, vector<128x128xf32>
    %cst = arith.constant dense<0.000000e+00> : vector<16x128xf32>
    %2 = tpu.matmul %0, %1, %cst {dimension_numbers = #tpu.dot_dimension_numbers<[1], [0], [0], [1], [0, 0, 1, 1], [], []>} : vector<16x128xf32>, vector<128x128xf32>, vector<16x128xf32> -> vector<16x128xf32>
    %c0_3 = arith.constant 0 : index
    %c0_4 = arith.constant 0 : index
    %3 = vector.load %arg3[%c0_3, %c0_4] : memref<1x128xf32, #tpu.memory_space<vmem>>, vector<1x128xf32>
    %4 = vector.broadcast %3 : vector<1x128xf32> to vector<16x128xf32>
    %5 = arith.addf %2, %4 : vector<16x128xf32>
    %cst_5 = arith.constant 0.000000e+00 : f32
    %6 = vector.broadcast %cst_5 : f32 to vector<16x128xf32>
    %7 = arith.maximumf %5, %6 : vector<16x128xf32>
    %c0_6 = arith.constant 0 : index
    %c0_7 = arith.constant 0 : index
    %8 = vector.load %arg4[%c0_6, %c0_7] : memref<128x128xf32, #tpu.memory_space<vmem>>, vector<128x128xf32>
    %cst_8 = arith.constant dense<0.000000e+00> : vector<16x128xf32>
    %9 = tpu.matmul %7, %8, %cst_8 {dimension_numbers = #tpu.dot_dimension_numbers<[1], [0], [0], [1], [0, 0, 1, 1], [], []>} : vector<16x128xf32>, vector<128x128xf32>, vector<16x128xf32> -> vector<16x128xf32>
    %c0_9 = arith.constant 0 : index
    %c0_10 = arith.constant 0 : index
    %10 = vector.load %arg5[%c0_9, %c0_10] : memref<1x128xf32, #tpu.memory_space<vmem>>, vector<1x128xf32>
    %11 = vector.broadcast %10 : vector<1x128xf32> to vector<16x128xf32>
    %12 = arith.addf %9, %11 : vector<16x128xf32>
    %c0_11 = arith.constant 0 : index
    %c0_12 = arith.constant 0 : index
    %13 = vector.load %arg6[%c0_11, %c0_12] : memref<16x128xf32, #tpu.memory_space<vmem>>, vector<16x128xf32>
    tpu.vector_store %arg6[%c0_11, %c0_12], %12 {strides = array<i32>} : memref<16x128xf32, #tpu.memory_space<vmem>>, vector<16x128xf32>,
    return
  }
  func.func @transform_0(%arg0: i32) -> (i32, i32) {
    %c0_i32 = arith.constant 0 : i32
    %c0_i32_0 = arith.constant 0 : i32
    return %arg0, %c0_i32 : i32, i32
  }
  func.func @transform_1(%arg0: i32) -> (i32, i32) {
    %c0_i32 = arith.constant 0 : i32
    %c0_i32_0 = arith.constant 0 : i32
    %c0_i32_1 = arith.constant 0 : i32
    return %c0_i32, %c0_i32_0 : i32, i32
  }
  func.func @transform_2(%arg0: i32) -> (i32, i32) {
    %c0_i32 = arith.constant 0 : i32
    %c0_i32_0 = arith.constant 0 : i32
    %c0_i32_1 = arith.constant 0 : i32
    return %c0_i32, %c0_i32_0 : i32, i32
  }
  func.func @transform_3(%arg0: i32) -> (i32, i32) {
    %c0_i32 = arith.constant 0 : i32
    %c0_i32_0 = arith.constant 0 : i32
    %c0_i32_1 = arith.constant 0 : i32
    return %c0_i32, %c0_i32_0 : i32, i32
  }
  func.func @transform_4(%arg0: i32) -> (i32, i32) {
    %c0_i32 = arith.constant 0 : i32
    %c0_i32_0 = arith.constant 0 : i32
    %c0_i32_1 = arith.constant 0 : i32
    return %c0_i32, %c0_i32_0 : i32, i32
  }
  func.func @transform_5(%arg0: i32) -> (i32, i32) {
    %c0_i32 = arith.constant 0 : i32
    %c0_i32_0 = arith.constant 0 : i32
    return %arg0, %c0_i32 : i32, i32
  }
}

</mosaic_0001>

<llo_original>
// kernel: classification_head.1
$region0: #{classification_head.1}
  #allocation0 [shape = 'u32[]', space=smem, size = 0x4, offset = 0x4, fixed_abs, tag = 'smem constant byte address 0x4 - core index']
  #allocation1 [shape = 'u32[72,128]{1,0:T(1,128)}', space=vmem, size = 0x9000, scoped, tag = 'internal scratch']
  %s0 = inlined_call_operand.vmem [shape: f32[16,128], index: 0, kind: input, shape index: {}]
  %s1 = inlined_call_operand.hbm [shape: f32[128,128], index: 1, kind: input, shape index: {}]
  %s2 = inlined_call_operand.vmem [shape: f32[1,128], index: 2, kind: input, shape index: {}]
  %s3 = inlined_call_operand.hbm [shape: f32[128,128], index: 3, kind: input, shape index: {}]
  %s4 = inlined_call_operand.vmem [shape: f32[1,128], index: 4, kind: input, shape index: {}]
  %s5 = inlined_call_operand.vmem [shape: f32[16,128], index: 5, kind: output, shape index: {}]
  %s6 = sld [smem:[#allocation0]]
  $region38: #{classification_head.1} parent=0
    _
  %s8 = ssub.s32 1, %s6
  %s9 = scalar_select 0, %s8, %s6
  $region1: #{classification_head.1} parent=0
    #allocation2 [shape = 'u8[65536]{0}', space=vmem, size = 0x10000, scoped, tag = 'input window, operand 1, single buffered']
    #allocation3 [shape = 's32[1]{0}', space=sflag, size = 0x4, scoped, tag = 'scoped memory for classification_head.1']
    #allocation4 [shape = 'u8[65536]{0}', space=vmem, size = 0x10000, scoped, tag = 'input window, operand 3, single buffered']
    #allocation5 [shape = 's32[1]{0}', space=sflag, size = 0x4, scoped, tag = 'scoped memory for classification_head.1']
    %10 = vsyncpa [#allocation3], 0
    %11 = vsyncpa [#allocation5], 0
    // Predicated region
    $region2: #{classification_head.1} parent=1 // pred_check
      _
    $region3: #{classification_head.1} parent=1 // pred_check_branch
      %13 = sbr.rel (0) target = $region5
    $region4: #{classification_head.1} parent=1 // pred_region
      _
    $region5: #{classification_head.1} parent=1 // pred_fallthru
      _
    // Predicated region
    $region6: #{classification_head.1} parent=1 // pred_check
      _
    $region7: #{classification_head.1} parent=1 // pred_check_branch
      %15 = sbr.rel (0) target = $region9
    $region8: #{classification_head.1} parent=1 // pred_region
      %17 = vsyncadd [#allocation3], 0
      %s18 = sshll.u32 %s1, 4
      %s19 = int_to_ptr.hbm [resolvable:$true] %s18
      %s20 = sshll.u32 [#allocation2], 4
      %s21 = int_to_ptr.vmem [resolvable:$true] %s20
      %26 = dma.hbm_to_vmem [thread:$0]  %s19, 2048, %s21, [#allocation3], 128, 128, 8
    $region9: #{classification_head.1} parent=1 // pred_fallthru
      _
    // Predicated region
    $region10: #{classification_head.1} parent=1 // pred_check
      _
    $region11: #{classification_head.1} parent=1 // pred_check_branch
      %28 = sbr.rel (0) target = $region13
    $region12: #{classification_head.1} parent=1 // pred_region
      _
    $region13: #{classification_head.1} parent=1 // pred_fallthru
      _
    // Predicated region
    $region14: #{classification_head.1} parent=1 // pred_check
      _
    $region15: #{classification_head.1} parent=1 // pred_check_branch
      %30 = sbr.rel (0) target = $region17
    $region16: #{classification_head.1} parent=1 // pred_region
      %32 = vsyncadd [#allocation5], 0
      %s33 = sshll.u32 %s3, 4
      %s34 = int_to_ptr.hbm [resolvable:$true] %s33
      %s35 = sshll.u32 [#allocation4], 4
      %s36 = int_to_ptr.vmem [resolvable:$true] %s35
      %41 = dma.hbm_to_vmem [thread:$0]  %s34, 2048, %s36, [#allocation5], 128, 128, 8
    $region17: #{classification_head.1} parent=1 // pred_fallthru
      _
    // Predicated region
    $region18: #{classification_head.1} parent=1 // pred_check
      _
    $region19: #{classification_head.1} parent=1 // pred_check_branch
      %43 = sbr.rel (0) target = $region21
    $region20: #{classification_head.1} parent=1 // pred_region
      _
    $region21: #{classification_head.1} parent=1 // pred_fallthru
      _
    // Predicated region
    $region22: #{classification_head.1} parent=1 // pred_check
      _
    $region23: #{classification_head.1} parent=1 // pred_check_branch
      %45 = sbr.rel (0) target = $region25
    $region24: #{classification_head.1} parent=1 // pred_region
      %47 = dma.done [#allocation3], 2048
    $region25: #{classification_head.1} parent=1 // pred_fallthru
      _
    // Predicated region
    $region26: #{classification_head.1} parent=1 // pred_check
      _
    $region27: #{classification_head.1} parent=1 // pred_check_branch
      %49 = sbr.rel (0) target = $region29
    $region28: #{classification_head.1} parent=1 // pred_region
      %51 = dma.done [#allocation5], 2048
    $region29: #{classification_head.1} parent=1 // pred_fallthru
      _
    %v52 = vld [vmem:[%s0] sm:$0xff]
    %v53 = vld [vmem:[%s0 + $0x8] sm:$0xff]
    %v54 = vld [vmem:[#allocation2] sm:$0xff]
    %v55 = vld [vmem:[#allocation2 + $0x8] sm:$0xff]
    %v56 = vld [vmem:[#allocation2 + $0x10] sm:$0xff]
    %v57 = vld [vmem:[#allocation2 + $0x18] sm:$0xff]
    %v58 = vld [vmem:[#allocation2 + $0x20] sm:$0xff]
    %v59 = vld [vmem:[#allocation2 + $0x28] sm:$0xff]
    %v60 = vld [vmem:[#allocation2 + $0x30] sm:$0xff]
    %v61 = vld [vmem:[#allocation2 + $0x38] sm:$0xff]
    %v62 = vld [vmem:[#allocation2 + $0x40] sm:$0xff]
    %v63 = vld [vmem:[#allocation2 + $0x48] sm:$0xff]
    %v64 = vld [vmem:[#allocation2 + $0x50] sm:$0xff]
    %v65 = vld [vmem:[#allocation2 + $0x58] sm:$0xff]
    %v66 = vld [vmem:[#allocation2 + $0x60] sm:$0xff]
    %v67 = vld [vmem:[#allocation2 + $0x68] sm:$0xff]
    %v68 = vld [vmem:[#allocation2 + $0x70] sm:$0xff]
    %v69 = vld [vmem:[#allocation2 + $0x78] sm:$0xff]
    %v70 = vld [vmem:[%s2] sm:$0x1]
    %v72 = vperm.slane %v70, 0
    %74 = vmatpush.msra.mxu0 %v69
    %75 = vmatpush.msra.mxu0 %v68
    %76 = vmatpush.msra.mxu0 %v67
    %77 = vmatpush.msra.mxu0 %v66
    %78 = vmatpush.msra.mxu0 %v65
    %79 = vmatpush.msra.mxu0 %v64
    %80 = vmatpush.msra.mxu0 %v63
    %81 = vmatpush.msra.mxu0 %v62
    %82 = vmatpush.msra.mxu0 %v61
    %83 = vmatpush.msra.mxu0 %v60
    %84 = vmatpush.msra.mxu0 %v59
    %85 = vmatpush.msra.mxu0 %v58
    %86 = vmatpush.msra.mxu0 %v57
    %87 = vmatpush.msra.mxu0 %v56
    %88 = vmatpush.msra.mxu0 %v55
    %89 = vmatpush.msra.mxu0 %v54
    %90 = vmatmul.f32.gmra.mxu0 %v52
    %v91 = vpop.f32.mrf.mxu0
    %v92 = vadd.f32 %v72, %v91
    %93 = vmatmul.f32.gmra.mxu0 %v53
    %v94 = vpop.f32.mrf.mxu0
    %v95 = vadd.f32 %v72, %v94
    %96 = vdwg.mxu0
    %v97 = vmax.f32 %v92, 0.0
    %v98 = vmax.f32 %v95, 0.0
    %v99 = vld [vmem:[#allocation4] sm:$0xff]
    %v100 = vld [vmem:[#allocation4 + $0x8] sm:$0xff]
    %v101 = vld [vmem:[#allocation4 + $0x10] sm:$0xff]
    %v102 = vld [vmem:[#allocation4 + $0x18] sm:$0xff]
    %v103 = vld [vmem:[#allocation4 + $0x20] sm:$0xff]
    %v104 = vld [vmem:[#allocation4 + $0x28] sm:$0xff]
    %v105 = vld [vmem:[#allocation4 + $0x30] sm:$0xff]
    %v106 = vld [vmem:[#allocation4 + $0x38] sm:$0xff]
    %v107 = vld [vmem:[#allocation4 + $0x40] sm:$0xff]
    %v108 = vld [vmem:[#allocation4 + $0x48] sm:$0xff]
    %v109 = vld [vmem:[#allocation4 + $0x50] sm:$0xff]
    %v110 = vld [vmem:[#allocation4 + $0x58] sm:$0xff]
    %v111 = vld [vmem:[#allocation4 + $0x60] sm:$0xff]
    %v112 = vld [vmem:[#allocation4 + $0x68] sm:$0xff]
    %v113 = vld [vmem:[#allocation4 + $0x70] sm:$0xff]
    %v114 = vld [vmem:[#allocation4 + $0x78] sm:$0xff]
    %v115 = vld [vmem:[%s4] sm:$0x1]
    %v117 = vperm.slane %v115, 0
    %119 = vmatpush.msra.mxu0 %v114
    %120 = vmatpush.msra.mxu0 %v113
    %121 = vmatpush.msra.mxu0 %v112
    %122 = vmatpush.msra.mxu0 %v111
    %123 = vmatpush.msra.mxu0 %v110
    %124 = vmatpush.msra.mxu0 %v109
    %125 = vmatpush.msra.mxu0 %v108
    %126 = vmatpush.msra.mxu0 %v107
    %127 = vmatpush.msra.mxu0 %v106
    %128 = vmatpush.msra.mxu0 %v105
    %129 = vmatpush.msra.mxu0 %v104
    %130 = vmatpush.msra.mxu0 %v103
    %131 = vmatpush.msra.mxu0 %v102
    %132 = vmatpush.msra.mxu0 %v101
    %133 = vmatpush.msra.mxu0 %v100
    %134 = vmatpush.msra.mxu0 %v99
    %135 = vmatmul.f32.gmra.mxu0 %v97
    %v136 = vpop.f32.mrf.mxu0
    %v137 = vadd.f32 %v117, %v136
    %138 = vmatmul.f32.gmra.mxu0 %v98
    %v139 = vpop.f32.mrf.mxu0
    %v140 = vadd.f32 %v117, %v139
    %141 = vdwg.mxu0
    %142 = vst [vmem:[%s5] sm:$0xff] %v137
    %143 = vst [vmem:[%s5 + $0x8] sm:$0xff] %v140
    // Predicated region
    $region30: #{classification_head.1} parent=1 // pred_check
      _
    $region31: #{classification_head.1} parent=1 // pred_check_branch
      %145 = sbr.rel (0) target = $region33
    $region32: #{classification_head.1} parent=1 // pred_region
      _
    $region33: #{classification_head.1} parent=1 // pred_fallthru
      _
    // Predicated region
    $region34: #{classification_head.1} parent=1 // pred_check
      _
    $region35: #{classification_head.1} parent=1 // pred_check_branch
      %147 = sbr.rel (0) target = $region37
    $region36: #{classification_head.1} parent=1 // pred_region
      _
    $region37: #{classification_head.1} parent=1 // pred_fallthru
      _
    %148 = vsyncpa [#allocation3], 1
    %149 = vsyncpa [#allocation5], 1

</llo_original>
